<compile_context>
chip_gen: v5e
topology: v5e:2x2
jax: 0.10.0
libtpu: 0.0.40
codegen_flags: <defaults>
</compile_context>

<pallas_src>
import functools

import jax
import jax.numpy as jnp
from jax.experimental import pallas as pl
from jax.experimental.pallas import tpu as pltpu


def _dropout_kernel(seed_ref, x_ref, o_ref, *, p, block_rows, width):
    """Elementwise dropout over one (block_rows, width) tile."""
    # Integer drop threshold in 24-bit space: drop iff rand24 < round(p * 2^24).
    thresh = jnp.int32(int(round(p * (1 << 24))))

    seed_u = seed_ref[0].astype(jnp.uint32)

    # Global element index of every element in this tile (tiling-invariant).
    base_row = (pl.program_id(0) * block_rows).astype(jnp.uint32)
    row = jax.lax.broadcasted_iota(jnp.uint32, x_ref.shape, 0) + base_row
    col = jax.lax.broadcasted_iota(jnp.uint32, x_ref.shape, 1)
    idx = row * jnp.uint32(width) + col

    # Counter-based hash (murmur3 finalizer) -> well-mixed 32 random bits.
    h = idx ^ seed_u
    h = h * jnp.uint32(0x9E3779B1)
    h = h ^ (h >> jnp.uint32(16))
    h = h * jnp.uint32(0x85EBCA6B)
    h = h ^ (h >> jnp.uint32(13))
    h = h * jnp.uint32(0xC2B2AE35)
    h = h ^ (h >> jnp.uint32(16))

    # Compare top 24 bits against the integer threshold (values < 2^24, so the
    # signed int32 compare is exact).
    rand24 = (h >> jnp.uint32(8)).astype(jnp.int32)
    keep = rand24 >= thresh

    x = x_ref[...]
    scale = jnp.asarray(1.0 / (1.0 - p), dtype=x.dtype)  # native dtype, no f32 round trip
    o_ref[...] = jnp.where(keep, x * scale, jnp.zeros_like(x))


def pallas_dropout(x, p, seed=0, training=True):
    """Elementwise dropout on TPU via Pallas. Returns array of same shape/dtype."""
    p = float(p)
    if (not training) or p <= 0.0:
        return x
    if p >= 1.0:
        # torch semantics: everything dropped; avoid inf scale.
        return jnp.zeros_like(x)

    orig_shape = x.shape
    flat = x.reshape(-1)
    n = flat.shape[0]

    # Lane-dense slab width (multiple of 128). Prefer a width that divides n
    # exactly so the pad/slice HBM copies are skipped (fast path).
    width = None
    for w in (512, 256, 128):
        if n % w == 0:
            width = w
            break
    pad = 0
    if width is None:
        width = 512
        pad = (-n) % width
        # TODO(synk): ragged tail handled by pad+slice; could be masked in-kernel.
        flat = jnp.pad(flat, (0, pad))
    rows = flat.shape[0] // width
    x2d = flat.reshape(rows, width)

    itemsize = jnp.dtype(x.dtype).itemsize
    # Target ~2 MiB per block: double-buffered in+out stays well inside the
    # default scoped-VMEM limit on all of v5e/v6e/v7x.
    target_rows = max(8, ((2 * 1024 * 1024) // (width * itemsize)) // 8 * 8)
    if rows <= target_rows:
        block_rows = rows           # single block == full array dims
    else:
        block_rows = target_rows    # multiple of 8; last block may be partial
    grid = (pl.cdiv(rows, block_rows),)

    seed_arr = jnp.asarray([int(seed) & 0x7FFFFFFF], dtype=jnp.int32)
    kernel = functools.partial(
        _dropout_kernel, p=p, block_rows=block_rows, width=width)

    out2d = pl.pallas_call(
        kernel,
        out_shape=jax.ShapeDtypeStruct((rows, width), x.dtype),
        grid_spec=pltpu.PrefetchScalarGridSpec(
            num_scalar_prefetch=1,
            grid=grid,
            in_specs=[pl.BlockSpec((block_rows, width),
                                   lambda i, seed_ref: (i, 0))],
            out_specs=pl.BlockSpec((block_rows, width),
                                   lambda i, seed_ref: (i, 0)),
        ),
        compiler_params=pltpu.CompilerParams(
            dimension_semantics=("parallel",),   # v7x: shard grid across both TCs
        ),
        cost_estimate=pl.CostEstimate(
            flops=12 * rows * width,
            transcendentals=0,
            bytes_accessed=2 * rows * width * itemsize,
        ),
    )(seed_arr, x2d)

    out_flat = out2d.reshape(-1)
    if pad:
        out_flat = out_flat[:n]
    return out_flat.reshape(orig_shape)


class Dropout:
    """Pallas-backed equivalent of the PyTorch Dropout wrapper module."""

    def __init__(self, p):
        self.p = float(p)
        self.training = True  # mirror nn.Module default

    def __call__(self, x, grid_H, seed=0):
        return pallas_dropout(x, self.p, seed, training=self.training), grid_H


if __name__ == "__main__":
    key = jax.random.PRNGKey(0)
    kx, kg = jax.random.split(key)

    # NCHW input, as the PyTorch module would receive.
    x = jax.random.normal(kx, (2, 4, 16, 16), dtype=jnp.float32)
    # grid_H is an opaque pass-through object in the reference module;
    # model it as a small array of group-grid coordinates.
    grid_H = jax.random.uniform(kg, (2, 16, 16, 2), dtype=jnp.float32)

    module = Dropout(p=0.3)
    out, grid_H_out = module(x, grid_H, seed=0)

    out = jax.block_until_ready(out)
    grid_H_out = jax.block_until_ready(grid_H_out)

    # Light sanity checks: shape/dtype preserved, grid_H untouched,
    # survivors scaled by 1/(1-p), drop fraction roughly p.
    assert out.shape == x.shape and out.dtype == x.dtype
    assert bool(jnp.all(grid_H_out == grid_H))
    nonzero = out != 0.0
    scale = 1.0 / 0.7
    ratio = jnp.where(nonzero, out / jnp.where(x == 0.0, 1.0, x), scale)
    assert bool(jnp.allclose(ratio, scale, atol=1e-4))
    drop_frac = 1.0 - jnp.mean(nonzero.astype(jnp.float32))
    assert 0.1 < float(drop_frac) < 0.5  # loose check around p=0.3

    # Eval mode / p edge cases behave like torch.
    module.training = False
    out_eval, _ = module(x, grid_H, seed=0)
    assert bool(jnp.all(out_eval == x))

    print("KERNEL_OK")
</pallas_src>

<mosaic_0001>
module attributes {stable_mosaic.version = 11 : i64} {
  func.func @_dropout_kernel(%arg0: i32, %arg1: memref<1xi32, #tpu.memory_space<smem>>, %arg2: memref<4x512xf32, #tpu.memory_space<vmem>>, %arg3: memref<4x512xf32, #tpu.memory_space<vmem>>) attributes {dimension_semantics = [#tpu.dimension_semantics<parallel>], iteration_bounds = array<i64: 1>, scalar_prefetch = 1 : i64, scratch_operands = 0 : i64, tpu.core_type = #tpu.core_type<tc>, window_params = [{transform_indices = @transform_0, window_bounds = array<i64: 4, 512>}, {transform_indices = @transform_1, window_bounds = array<i64: 4, 512>}]} {
    %c0 = arith.constant 0 : index
    %0 = memref.load %arg1[%c0] : memref<1xi32, #tpu.memory_space<smem>>
    %c4_i32 = arith.constant 4 : i32
    %1 = arith.muli %arg0, %c4_i32 : i32
    %2 = tpu.iota {dimensions = array<i32: 0>} : vector<4x512xi32>
    %3 = vector.broadcast %1 : i32 to vector<4x512xi32>
    %4 = arith.addi %2, %3 : vector<4x512xi32>
    %5 = tpu.iota {dimensions = array<i32: 1>} : vector<4x512xi32>
    %c512_i32 = arith.constant 512 : i32
    %6 = vector.broadcast %c512_i32 : i32 to vector<4x512xi32>
    %7 = arith.muli %4, %6 : vector<4x512xi32>
    %8 = arith.addi %7, %5 : vector<4x512xi32>
    %9 = vector.broadcast %0 : i32 to vector<4x512xi32>
    %10 = arith.xori %8, %9 : vector<4x512xi32>
    %c-1640531535_i32 = arith.constant -1640531535 : i32
    %11 = vector.broadcast %c-1640531535_i32 : i32 to vector<4x512xi32>
    %12 = arith.muli %10, %11 : vector<4x512xi32>
    %c16_i32 = arith.constant 16 : i32
    %13 = vector.broadcast %c16_i32 : i32 to vector<4x512xi32>
    %14 = arith.shrui %12, %13 : vector<4x512xi32>
    %15 = arith.xori %12, %14 : vector<4x512xi32>
    %c-2048144789_i32 = arith.constant -2048144789 : i32
    %16 = vector.broadcast %c-2048144789_i32 : i32 to vector<4x512xi32>
    %17 = arith.muli %15, %16 : vector<4x512xi32>
    %c13_i32 = arith.constant 13 : i32
    %18 = vector.broadcast %c13_i32 : i32 to vector<4x512xi32>
    %19 = arith.shrui %17, %18 : vector<4x512xi32>
    %20 = arith.xori %17, %19 : vector<4x512xi32>
    %c-1028477387_i32 = arith.constant -1028477387 : i32
    %21 = vector.broadcast %c-1028477387_i32 : i32 to vector<4x512xi32>
    %22 = arith.muli %20, %21 : vector<4x512xi32>
    %c16_i32_0 = arith.constant 16 : i32
    %23 = vector.broadcast %c16_i32_0 : i32 to vector<4x512xi32>
    %24 = arith.shrui %22, %23 : vector<4x512xi32>
    %25 = arith.xori %22, %24 : vector<4x512xi32>
    %c8_i32 = arith.constant 8 : i32
    %26 = vector.broadcast %c8_i32 : i32 to vector<4x512xi32>
    %27 = arith.shrui %25, %26 : vector<4x512xi32>
    %c5033165_i32 = arith.constant 5033165 : i32
    %28 = vector.broadcast %c5033165_i32 : i32 to vector<4x512xi32>
    %29 = arith.cmpi sge, %27, %28 : vector<4x512xi32>
    %c0_1 = arith.constant 0 : index
    %c0_2 = arith.constant 0 : index
    %30 = vector.load %arg2[%c0_1, %c0_2] : memref<4x512xf32, #tpu.memory_space<vmem>>, vector<4x512xf32>
    %cst = arith.constant 1.42857146 : f32
    %31 = vector.broadcast %cst : f32 to vector<4x512xf32>
    %32 = arith.mulf %30, %31 : vector<4x512xf32>
    %cst_3 = arith.constant 0.000000e+00 : f32
    %33 = vector.broadcast %cst_3 : f32 to vector<4x512xf32>
    %34 = arith.select %29, %32, %33 : vector<4x512xi1>, vector<4x512xf32>
    %c0_4 = arith.constant 0 : index
    %c0_5 = arith.constant 0 : index
    %35 = vector.load %arg3[%c0_4, %c0_5] : memref<4x512xf32, #tpu.memory_space<vmem>>, vector<4x512xf32>
    tpu.vector_store %arg3[%c0_4, %c0_5], %34 {strides = array<i32>} : memref<4x512xf32, #tpu.memory_space<vmem>>, vector<4x512xf32>,
    return
  }
  func.func @transform_0(%arg0: i32, %arg1: memref<1xi32, #tpu.memory_space<smem>>) -> (i32, i32) {
    %c0_i32 = arith.constant 0 : i32
    %c0_i32_0 = arith.constant 0 : i32
    return %arg0, %c0_i32 : i32, i32
  }
  func.func @transform_1(%arg0: i32, %arg1: memref<1xi32, #tpu.memory_space<smem>>) -> (i32, i32) {
    %c0_i32 = arith.constant 0 : i32
    %c0_i32_0 = arith.constant 0 : i32
    return %arg0, %c0_i32 : i32, i32
  }
}

</mosaic_0001>

<llo_original>
// kernel: tpu_custom_call.1
$region0: #{tpu_custom_call.1}
  #allocation0 [shape = 'u32[]', space=smem, size = 0x4, offset = 0x4, fixed_abs, tag = 'smem constant byte address 0x4 - core index']
  #allocation1 [shape = 'u32[72,128]{1,0:T(1,128)}', space=vmem, size = 0x9000, scoped, tag = 'internal scratch']
  #allocation2 [shape = 's32[1]{0}', space=sflag, size = 0x4, scoped, tag = 'scoped memory for tpu_custom_call.1']
  #allocation3 [shape = 's32[1]{0:T(128)S(6)}', space=smem, size = 0x200, scoped, tag = 'prefetched SMEM operand 0']
  %s0 = inlined_call_operand.<no memory space> [shape: s32[1], index: 0, kind: input, shape index: {}]
  %s1 = inlined_call_operand.hbm [shape: f32[4,512], index: 1, kind: input, shape index: {}]
  %s2 = inlined_call_operand.hbm [shape: f32[4,512], index: 2, kind: output, shape index: {}]
  %s3 = sld [smem:[#allocation0]]
  $region18: #{tpu_custom_call.1} parent=0
    _
  %s5 = ssub.s32 1, %s3
  %s6 = scalar_select 0, %s5, %s3
  %7 = sst [smem:[#allocation3]] %s0
  $region1: #{tpu_custom_call.1} parent=0
    #allocation4 [shape = 'u8[8192]{0}', space=vmem, size = 0x2000, scoped, tag = 'input window, operand 1, single buffered']
    #allocation5 [shape = 's32[1]{0}', space=sflag, size = 0x4, scoped, tag = 'scoped memory for tpu_custom_call.1']
    #allocation6 [shape = 's32[1]{0}', space=sflag, size = 0x4, scoped, tag = 'scoped memory for tpu_custom_call.1']
    #allocation7 [shape = 'u8[8192]{0}', space=vmem, size = 0x2000, scoped, tag = 'output window, operand 0, single buffered']
    %8 = vsyncpa [#allocation5], 0
    %9 = vsyncpa [#allocation6], 0
    // Predicated region
    $region2: #{tpu_custom_call.1} parent=1 // pred_check
      _
    $region3: #{tpu_custom_call.1} parent=1 // pred_check_branch
      %11 = sbr.rel (0) target = $region5
    $region4: #{tpu_custom_call.1} parent=1 // pred_region
      %13 = vsyncadd [#allocation5], 0
      %s15 = sshll.u32 %s1, 4
      %s16 = int_to_ptr.hbm [resolvable:$true] %s15
      %s17 = sshll.u32 [#allocation4], 4
      %s18 = int_to_ptr.vmem [resolvable:$true] %s17
      %20 = dma.hbm_to_vmem [thread:$0]  %s16, 256, %s18, [#allocation5]
    $region5: #{tpu_custom_call.1} parent=1 // pred_fallthru
      _
    // Predicated region
    $region6: #{tpu_custom_call.1} parent=1 // pred_check
      _
    $region7: #{tpu_custom_call.1} parent=1 // pred_check_branch
      %22 = sbr.rel (0) target = $region9
    $region8: #{tpu_custom_call.1} parent=1 // pred_region
      %24 = dma.done [#allocation5], 256
    $region9: #{tpu_custom_call.1} parent=1 // pred_fallthru
      _
    %s25 = sld [smem:[#allocation3]]
    %s26 = smul.u32 0, 4
    %v27 = vlaneseq
    %v28 = vshrl.u32 %v27, 7
    %v29 = vstv %s26
    %v30 = vadd.s32 %v28, %v29
    %v31 = vlaneseq
    %v32 = vand.u32 %v31, 127
    %v33 = vadd.s32 %v32, 128
    %v34 = vadd.s32 %v32, 256
    %v35 = vadd.s32 %v32, 384
    %v36 = vmul.u32 %v30, 512
    %v37 = vadd.s32 %v36, %v32
    %v38 = vadd.s32 %v36, %v33
    %v39 = vadd.s32 %v36, %v34
    %v40 = vadd.s32 %v36, %v35
    %v41 = vstv %s25
    %v42 = vxor.u32 %v37, %v41
    %v43 = vxor.u32 %v38, %v41
    %v44 = vxor.u32 %v39, %v41
    %v45 = vxor.u32 %v40, %v41
    %v46 = vmul.u32 %v42, 2654435761
    %v47 = vmul.u32 %v43, 2654435761
    %v48 = vmul.u32 %v44, 2654435761
    %v49 = vmul.u32 %v45, 2654435761
    %v50 = vshrl.u32 %v46, 16
    %v51 = vshrl.u32 %v47, 16
    %v52 = vshrl.u32 %v48, 16
    %v53 = vshrl.u32 %v49, 16
    %v54 = vxor.u32 %v46, %v50
    %v55 = vxor.u32 %v47, %v51
    %v56 = vxor.u32 %v48, %v52
    %v57 = vxor.u32 %v49, %v53
    %v58 = vmul.u32 %v54, 2246822507
    %v59 = vmul.u32 %v55, 2246822507
    %v60 = vmul.u32 %v56, 2246822507
    %v61 = vmul.u32 %v57, 2246822507
    %v62 = vshrl.u32 %v58, 13
    %v63 = vshrl.u32 %v59, 13
    %v64 = vshrl.u32 %v60, 13
    %v65 = vshrl.u32 %v61, 13
    %v66 = vxor.u32 %v58, %v62
    %v67 = vxor.u32 %v59, %v63
    %v68 = vxor.u32 %v60, %v64
    %v69 = vxor.u32 %v61, %v65
    %v70 = vmul.u32 %v66, 3266489909
    %v71 = vmul.u32 %v67, 3266489909
    %v72 = vmul.u32 %v68, 3266489909
    %v73 = vmul.u32 %v69, 3266489909
    %v74 = vshrl.u32 %v70, 16
    %v75 = vshrl.u32 %v71, 16
    %v76 = vshrl.u32 %v72, 16
    %v77 = vshrl.u32 %v73, 16
    %v78 = vxor.u32 %v70, %v74
    %v79 = vxor.u32 %v71, %v75
    %v80 = vxor.u32 %v72, %v76
    %v81 = vxor.u32 %v73, %v77
    %v82 = vshrl.u32 %v78, 8
    %v83 = vshrl.u32 %v79, 8
    %v84 = vshrl.u32 %v80, 8
    %v85 = vshrl.u32 %v81, 8
    %vm86 = vcmp.ge.s32.totalorder %v82, 5033165
    %vm87 = vcmp.ge.s32.totalorder %v83, 5033165
    %vm88 = vcmp.ge.s32.totalorder %v84, 5033165
    %vm89 = vcmp.ge.s32.totalorder %v85, 5033165
    %v90 = vld [vmem:[#allocation4] sm:$0xff]
    %v91 = vld [vmem:[#allocation4 + $0x8] sm:$0xff]
    %v92 = vmul.f32 %v90, 1.4285715
    %v93 = vmul.f32 %v91, 1.4285715
    %96 = vst [vmem:[#allocation1] ss:$2 sm:$0xff] %v92
    %s97 = scalar_lea.vmem [#allocation1], 16
    %98 = vst [vmem:[%s97] ss:$2 sm:$0xff] %v93
    %v99 = vld.sshfl [vmem:[#allocation1] sm:$0xff pattern:$0x75316420]
    %v100 = vld.sshfl [vmem:[#allocation1 + $0x8] sm:$0xff pattern:$0x75316420]
    %v101 = vld.sshfl [vmem:[#allocation1 + $0x10] sm:$0xff pattern:$0x75316420]
    %v102 = vld.sshfl [vmem:[#allocation1 + $0x18] sm:$0xff pattern:$0x75316420]
    %v107 = vsel %vm86, %v99, 0.0
    %v108 = vsel %vm87, %v100, 0.0
    %v109 = vsel %vm88, %v101, 0.0
    %v110 = vsel %vm89, %v102, 0.0
    %v115 = vrot.slane %v108, 4
    %v116 = vrot.slane %v110, 4
    %vm117 = vcmask 1043456
    %v118 = vsel %vm117, %v107, %v115
    %v119 = vsel %vm117, %v109, %v116
    %122 = vst [vmem:[#allocation7] sm:$0xff] %v118
    %123 = vst [vmem:[#allocation7 + $0x8] sm:$0xff] %v119
    // Predicated region
    $region10: #{tpu_custom_call.1} parent=1 // pred_check
      _
    $region11: #{tpu_custom_call.1} parent=1 // pred_check_branch
      %125 = sbr.rel (0) target = $region13
    $region12: #{tpu_custom_call.1} parent=1 // pred_region
      %127 = vsyncadd [#allocation6], 0
      %s129 = sshll.u32 [#allocation7], 4
      %s130 = int_to_ptr.vmem [resolvable:$true] %s129
      %s131 = sshll.u32 %s2, 4
      %s132 = int_to_ptr.hbm [resolvable:$true] %s131
      %134 = dma.vmem_to_hbm [thread:$0]  %s130, 256, %s132, [#allocation6]
    $region13: #{tpu_custom_call.1} parent=1 // pred_fallthru
      _
    // Predicated region
    $region14: #{tpu_custom_call.1} parent=1 // pred_check
      _
    $region15: #{tpu_custom_call.1} parent=1 // pred_check_branch
      %136 = sbr.rel (0) target = $region17
    $region16: #{tpu_custom_call.1} parent=1 // pred_region
      %138 = dma.done [#allocation6], 256
    $region17: #{tpu_custom_call.1} parent=1 // pred_fallthru
      _
    %139 = vsyncpa [#allocation5], 1
    %140 = vsyncpa [#allocation6], 1

</llo_original>
